<compile_context>
chip_gen: v6e
topology: v6e:2x2x1
jax: 0.10.0
libtpu: 0.0.40
codegen_flags: <defaults>
</compile_context>

<pallas_src>
import functools

import jax
import jax.numpy as jnp
import numpy as np
from jax.experimental import pallas as pl
from jax.experimental.pallas import tpu as pltpu

EPS = 1e-5
LANES = 128                # channel dims padded to multiples of this (lane width)
HALO = 8                   # 1-row zero halo, padded to sublane (8) alignment
_MXU_DTYPE = jnp.bfloat16  # matmul operands only; accumulation & elementwise stay f32


def _round_up(n, m):
    return ((n + m - 1) // m) * m


# ----------------------------------- kernel body ---------------------------------------

def _encoder_block_kernel(n_layers, *refs):
    """refs = (x, mask_prev, mask_next, [w, gamma, beta]*n_layers, out, halo_scratch)."""
    x_ref, mprev_ref, mnext_ref = refs[0], refs[1], refs[2]
    params = refs[3:3 + 3 * n_layers]
    o_ref = refs[3 + 3 * n_layers]
    hbuf = refs[3 + 3 * n_layers + 1]

    rows = x_ref.shape[0]
    mprev = mprev_ref[...]   # (rows, 1) f32: 0 where l == 0      (left  'same' pad)
    mnext = mnext_ref[...]   # (rows, 1) f32: 0 where l == L - 1  (right 'same' pad)

    # Zero the halo rows once; each layer re-stages its activation between them.
    zhalo = jnp.zeros((HALO, hbuf.shape[1]), jnp.float32)
    hbuf[0:HALO, :] = zhalo
    hbuf[HALO + rows:HALO + rows + HALO, :] = zhalo

    h = x_ref[...]
    for li in range(n_layers):
        w_ref = params[3 * li]
        g_ref = params[3 * li + 1]
        b_ref = params[3 * li + 2]
        cin = h.shape[1]

        # --- Conv1d(k=3, stride=1, padding=1), no bias -------------------------------
        # Stage h inside the zero halo; the +/-1 taps become sublane-offset loads
        # (no selector matmuls), masked at batch boundaries on the VPU.
        hbuf[HALO:HALO + rows, 0:cin] = h
        h_prev = hbuf[HALO - 1:HALO - 1 + rows, 0:cin] * mprev
        h_next = hbuf[HALO + 1:HALO + 1 + rows, 0:cin] * mnext
        # All 3 taps in ONE MXU matmul against the host-packed (3*cin, cout) bf16 weight.
        operand = jnp.concatenate([h_prev, h, h_next], axis=1).astype(_MXU_DTYPE)
        y = jnp.dot(operand, w_ref[...], preferred_element_type=jnp.float32)

        # --- BatchNorm1d (training-mode batch stats, biased var) + ReLU --------------
        cout = y.shape[1]
        stats = jnp.sum(jnp.concatenate([y, y * y], axis=1), axis=0, keepdims=True)
        stats = stats * (1.0 / rows)
        mean = stats[:, :cout]
        var = stats[:, cout:] - mean * mean
        scale = g_ref[...] * jax.lax.rsqrt(var + EPS)    # (1, cout)
        shift = b_ref[...] - mean * scale                # (1, cout)
        h = jnp.maximum(y * scale + shift, 0.0)

    o_ref[...] = h


# ------------------------------------ wrapper -------------------------------------------

def _encoder_block_fwd(x, params):
    """x: (B, Cin, L) float32 (PyTorch NCL).
    params: list of (w (3, Cin, Cout), gamma (Cout,), beta (Cout,)) conv-bn-relu layers.
    Returns (B, Cout_last, L) float32."""
    B, Cin, L = x.shape
    rows = B * L
    cin_p = _round_up(Cin, LANES)

    # NCL -> flattened (B*L, C) rows (channels on the 128-lane axis), zero-padded lanes.
    x_flat = jnp.transpose(x, (0, 2, 1)).reshape(rows, Cin).astype(jnp.float32)
    x_flat = jnp.pad(x_flat, ((0, 0), (0, cin_p - Cin)))

    # Batch-boundary masks for the k=3 'same' padding (trace-time constants).
    l_idx = np.arange(rows) % L
    mprev = jnp.asarray((l_idx != 0).astype(np.float32).reshape(rows, 1))
    mnext = jnp.asarray((l_idx != L - 1).astype(np.float32).reshape(rows, 1))

    # Pack per-layer weights: pad channels to lane multiples, stack the 3 taps along K,
    # pre-cast to bf16.  BN gamma/beta padded with zeros (padded channels stay 0).
    inputs = []
    widths = [cin_p]
    cp_prev = cin_p
    cout = Cin
    for (w, g, b) in params:
        _, ci, co = w.shape
        cp = _round_up(co, LANES)
        wp = jnp.zeros((3, cp_prev, cp), jnp.float32).at[:, :ci, :co].set(w)
        wp = wp.reshape(3 * cp_prev, cp).astype(_MXU_DTYPE)
        gp = jnp.zeros((1, cp), jnp.float32).at[0, :co].set(jnp.reshape(g, (-1,)))
        bp = jnp.zeros((1, cp), jnp.float32).at[0, :co].set(jnp.reshape(b, (-1,)))
        inputs += [wp, gp, bp]
        widths.append(cp)
        cp_prev = cp
        cout = co

    max_cp = max(widths)
    kernel = functools.partial(_encoder_block_kernel, len(params))
    out_flat = pl.pallas_call(
        kernel,
        out_shape=jax.ShapeDtypeStruct((rows, cp_prev), jnp.float32),
        in_specs=[pl.BlockSpec(memory_space=pltpu.MemorySpace.VMEM)] * (3 + len(inputs)),
        out_specs=pl.BlockSpec(memory_space=pltpu.MemorySpace.VMEM),
        scratch_shapes=[pltpu.VMEM((rows + 2 * HALO, max_cp), jnp.float32)],
        compiler_params=pltpu.CompilerParams(vmem_limit_bytes=32 * 1024 * 1024),
    )(x_flat, mprev, mnext, *inputs)

    # Lane-dense (rows, 128k) slab -> (B, Cout, L); channel padding sliced off in XLA.
    return jnp.transpose(out_flat[:, :cout].reshape(B, L, cout), (0, 2, 1))


encoder_block_fused = jax.jit(_encoder_block_fwd)


# ------------------------------ pure-JAX reference (check) ------------------------------

def _ref_conv_bn_relu(x_nlc, w, gamma, beta):
    # Same math/precision as the kernel: bf16 matmul operands, f32 accumulation,
    # f32 batch-stats BatchNorm (biased var) + ReLU.  Conv bias omitted (cancels).
    B, L, _ = x_nlc.shape
    xpad = jnp.pad(x_nlc, ((0, 0), (1, 1), (0, 0))).astype(_MXU_DTYPE)
    wb = w.astype(_MXU_DTYPE)
    y = jnp.zeros((B, L, w.shape[-1]), jnp.float32)
    for k in range(3):
        y = y + jnp.einsum("blc,co->blo", xpad[:, k:k + L, :], wb[k],
                           preferred_element_type=jnp.float32)
    n = B * L
    mean = jnp.sum(y, axis=(0, 1), keepdims=True) / n
    var = jnp.sum(y * y, axis=(0, 1), keepdims=True) / n - mean * mean
    scale = gamma.reshape(1, 1, -1) * jax.lax.rsqrt(var + EPS)
    shift = beta.reshape(1, 1, -1) - mean * scale
    return jnp.maximum(y * scale + shift, 0.0)


def _ref_encoder_block(x_ncl, params):
    h = jnp.transpose(x_ncl, (0, 2, 1))
    for (w, g, b) in params:
        h = _ref_conv_bn_relu(h, w, g, b)
    return jnp.transpose(h, (0, 2, 1))


# --------------------------------- parameter init ---------------------------------------

def init_conv_bn(key, cin, cout, k=3):
    # PyTorch Conv1d default-ish init range.  Conv bias intentionally omitted: it
    # cancels exactly under training-mode BatchNorm (y - mean).
    bound = 1.0 / (cin * k) ** 0.5
    w = jax.random.uniform(key, (k, cin, cout), jnp.float32, -bound, bound)
    return (w, jnp.ones((cout,), jnp.float32), jnp.zeros((cout,), jnp.float32))


def init_encoder_block(key, cin, cout):
    k1, k2 = jax.random.split(key)
    return [init_conv_bn(k1, cin, cout), init_conv_bn(k2, cout, cout)]


# --------------------------------------- main -------------------------------------------

if __name__ == "__main__":
    key = jax.random.PRNGKey(0)
    k_p, k_x = jax.random.split(key)

    B, CIN, COUT, L = 2, 4, 32, 16
    params = init_encoder_block(k_p, CIN, COUT)
    x = jax.random.normal(k_x, (B, CIN, L), jnp.float32)

    out = encoder_block_fused(x, params)
    jax.block_until_ready(out)
    assert out.shape == (B, COUT, L), out.shape

    ref = _ref_encoder_block(x, params)
    err = float(jnp.max(jnp.abs(out - ref)))
    assert err < 2e-2, err

    print("KERNEL_OK")
</pallas_src>

<mosaic_0001>
module attributes {stable_mosaic.version = 11 : i64} {
  func.func @_encoder_block_kernel(%arg0: memref<32x128xf32, #tpu.memory_space<vmem>>, %arg1: memref<32x1xf32, #tpu.memory_space<vmem>>, %arg2: memref<32x1xf32, #tpu.memory_space<vmem>>, %arg3: memref<384x128xbf16, #tpu.memory_space<vmem>>, %arg4: memref<1x128xf32, #tpu.memory_space<vmem>>, %arg5: memref<1x128xf32, #tpu.memory_space<vmem>>, %arg6: memref<384x128xbf16, #tpu.memory_space<vmem>>, %arg7: memref<1x128xf32, #tpu.memory_space<vmem>>, %arg8: memref<1x128xf32, #tpu.memory_space<vmem>>, %arg9: memref<32x128xf32, #tpu.memory_space<vmem>>, %arg10: memref<48x128xf32, #tpu.memory_space<vmem>>) attributes {dimension_semantics = [], scalar_prefetch = 0 : i64, scratch_operands = 1 : i64, tpu.core_type = #tpu.core_type<tc>} {
    %c0 = arith.constant 0 : index
    %c0_0 = arith.constant 0 : index
    %0 = vector.load %arg1[%c0, %c0_0] : memref<32x1xf32, #tpu.memory_space<vmem>>, vector<32x1xf32>
    %c0_1 = arith.constant 0 : index
    %c0_2 = arith.constant 0 : index
    %1 = vector.load %arg2[%c0_1, %c0_2] : memref<32x1xf32, #tpu.memory_space<vmem>>, vector<32x1xf32>
    %cst = arith.constant 0.000000e+00 : f32
    %2 = vector.broadcast %cst : f32 to vector<8x128xf32>
    %c0_3 = arith.constant 0 : index
    %c0_4 = arith.constant 0 : index
    %3 = vector.load %arg10[%c0_3, %c0_4] : memref<48x128xf32, #tpu.memory_space<vmem>>, vector<8x128xf32>
    tpu.vector_store %arg10[%c0_3, %c0_4], %2 {strides = array<i32>} : memref<48x128xf32, #tpu.memory_space<vmem>>, vector<8x128xf32>,
    %c40 = arith.constant 40 : index
    %c0_5 = arith.constant 0 : index
    %4 = vector.load %arg10[%c40, %c0_5] : memref<48x128xf32, #tpu.memory_space<vmem>>, vector<8x128xf32>
    tpu.vector_store %arg10[%c40, %c0_5], %2 {strides = array<i32>} : memref<48x128xf32, #tpu.memory_space<vmem>>, vector<8x128xf32>,
    %c0_6 = arith.constant 0 : index
    %c0_7 = arith.constant 0 : index
    %5 = vector.load %arg0[%c0_6, %c0_7] : memref<32x128xf32, #tpu.memory_space<vmem>>, vector<32x128xf32>
    %c8 = arith.constant 8 : index
    %c0_8 = arith.constant 0 : index
    %6 = vector.load %arg10[%c8, %c0_8] : memref<48x128xf32, #tpu.memory_space<vmem>>, vector<32x128xf32>
    tpu.vector_store %arg10[%c8, %c0_8], %5 {strides = array<i32>} : memref<48x128xf32, #tpu.memory_space<vmem>>, vector<32x128xf32>,
    %c7 = arith.constant 7 : index
    %c0_9 = arith.constant 0 : index
    %7 = vector.load %arg10[%c7, %c0_9] : memref<48x128xf32, #tpu.memory_space<vmem>>, vector<32x128xf32>
    %8 = vector.broadcast %0 : vector<32x1xf32> to vector<32x128xf32>
    %9 = arith.mulf %7, %8 : vector<32x128xf32>
    %c9 = arith.constant 9 : index
    %c0_10 = arith.constant 0 : index
    %10 = vector.load %arg10[%c9, %c0_10] : memref<48x128xf32, #tpu.memory_space<vmem>>, vector<32x128xf32>
    %11 = vector.broadcast %1 : vector<32x1xf32> to vector<32x128xf32>
    %12 = arith.mulf %10, %11 : vector<32x128xf32>
    %13 = tpu.concatenate %9, %5, %12 in 1 : vector<32x128xf32>, vector<32x128xf32>, vector<32x128xf32> -> vector<32x384xf32>
    %14 = arith.truncf %13 : vector<32x384xf32> to vector<32x384xbf16>
    %c0_11 = arith.constant 0 : index
    %c0_12 = arith.constant 0 : index
    %15 = vector.load %arg3[%c0_11, %c0_12] : memref<384x128xbf16, #tpu.memory_space<vmem>>, vector<384x128xbf16>
    %cst_13 = arith.constant dense<0.000000e+00> : vector<32x128xf32>
    %16 = tpu.matmul %14, %15, %cst_13 {dimension_numbers = #tpu.dot_dimension_numbers<[1], [0], [0], [1], [0, 0, 1, 1], [], []>} : vector<32x384xbf16>, vector<384x128xbf16>, vector<32x128xf32> -> vector<32x128xf32>
    %17 = arith.mulf %16, %16 : vector<32x128xf32>
    %18 = tpu.concatenate %16, %17 in 1 : vector<32x128xf32>, vector<32x128xf32> -> vector<32x256xf32>
    %cst_14 = arith.constant dense<0.000000e+00> : vector<256xf32>
    %19 = vector.multi_reduction <add>, %18, %cst_14 [0] : vector<32x256xf32> to vector<256xf32>
    %20 = vector.shape_cast %19 : vector<256xf32> to vector<1x256xf32>
    %cst_15 = arith.constant 3.125000e-02 : f32
    %21 = vector.broadcast %cst_15 : f32 to vector<1x256xf32>
    %22 = arith.mulf %20, %21 : vector<1x256xf32>
    %23 = vector.extract_strided_slice %22 {offsets = [0, 0], sizes = [1, 128], strides = [1, 1]} : vector<1x256xf32> to vector<1x128xf32>
    %24 = vector.extract_strided_slice %22 {offsets = [0, 128], sizes = [1, 128], strides = [1, 1]} : vector<1x256xf32> to vector<1x128xf32>
    %25 = arith.mulf %23, %23 : vector<1x128xf32>
    %26 = arith.subf %24, %25 : vector<1x128xf32>
    %c0_16 = arith.constant 0 : index
    %c0_17 = arith.constant 0 : index
    %27 = vector.load %arg4[%c0_16, %c0_17] : memref<1x128xf32, #tpu.memory_space<vmem>>, vector<1x128xf32>
    %cst_18 = arith.constant 9.99999974E-6 : f32
    %28 = vector.broadcast %cst_18 : f32 to vector<1x128xf32>
    %29 = arith.addf %26, %28 : vector<1x128xf32>
    %30 = math.rsqrt %29 : vector<1x128xf32>
    %31 = arith.mulf %27, %30 : vector<1x128xf32>
    %c0_19 = arith.constant 0 : index
    %c0_20 = arith.constant 0 : index
    %32 = vector.load %arg5[%c0_19, %c0_20] : memref<1x128xf32, #tpu.memory_space<vmem>>, vector<1x128xf32>
    %33 = arith.mulf %23, %31 : vector<1x128xf32>
    %34 = arith.subf %32, %33 : vector<1x128xf32>
    %35 = vector.broadcast %31 : vector<1x128xf32> to vector<32x128xf32>
    %36 = arith.mulf %16, %35 : vector<32x128xf32>
    %37 = vector.broadcast %34 : vector<1x128xf32> to vector<32x128xf32>
    %38 = arith.addf %36, %37 : vector<32x128xf32>
    %cst_21 = arith.constant 0.000000e+00 : f32
    %39 = vector.broadcast %cst_21 : f32 to vector<32x128xf32>
    %40 = arith.maximumf %38, %39 : vector<32x128xf32>
    %c8_22 = arith.constant 8 : index
    %c0_23 = arith.constant 0 : index
    %41 = vector.load %arg10[%c8_22, %c0_23] : memref<48x128xf32, #tpu.memory_space<vmem>>, vector<32x128xf32>
    tpu.vector_store %arg10[%c8_22, %c0_23], %40 {strides = array<i32>} : memref<48x128xf32, #tpu.memory_space<vmem>>, vector<32x128xf32>,
    %c7_24 = arith.constant 7 : index
    %c0_25 = arith.constant 0 : index
    %42 = vector.load %arg10[%c7_24, %c0_25] : memref<48x128xf32, #tpu.memory_space<vmem>>, vector<32x128xf32>
    %43 = vector.broadcast %0 : vector<32x1xf32> to vector<32x128xf32>
    %44 = arith.mulf %42, %43 : vector<32x128xf32>
    %c9_26 = arith.constant 9 : index
    %c0_27 = arith.constant 0 : index
    %45 = vector.load %arg10[%c9_26, %c0_27] : memref<48x128xf32, #tpu.memory_space<vmem>>, vector<32x128xf32>
    %46 = vector.broadcast %1 : vector<32x1xf32> to vector<32x128xf32>
    %47 = arith.mulf %45, %46 : vector<32x128xf32>
    %48 = tpu.concatenate %44, %40, %47 in 1 : vector<32x128xf32>, vector<32x128xf32>, vector<32x128xf32> -> vector<32x384xf32>
    %49 = arith.truncf %48 : vector<32x384xf32> to vector<32x384xbf16>
    %c0_28 = arith.constant 0 : index
    %c0_29 = arith.constant 0 : index
    %50 = vector.load %arg6[%c0_28, %c0_29] : memref<384x128xbf16, #tpu.memory_space<vmem>>, vector<384x128xbf16>
    %cst_30 = arith.constant dense<0.000000e+00> : vector<32x128xf32>
    %51 = tpu.matmul %49, %50, %cst_30 {dimension_numbers = #tpu.dot_dimension_numbers<[1], [0], [0], [1], [0, 0, 1, 1], [], []>} : vector<32x384xbf16>, vector<384x128xbf16>, vector<32x128xf32> -> vector<32x128xf32>
    %52 = arith.mulf %51, %51 : vector<32x128xf32>
    %53 = tpu.concatenate %51, %52 in 1 : vector<32x128xf32>, vector<32x128xf32> -> vector<32x256xf32>
    %cst_31 = arith.constant dense<0.000000e+00> : vector<256xf32>
    %54 = vector.multi_reduction <add>, %53, %cst_31 [0] : vector<32x256xf32> to vector<256xf32>
    %55 = vector.shape_cast %54 : vector<256xf32> to vector<1x256xf32>
    %cst_32 = arith.constant 3.125000e-02 : f32
    %56 = vector.broadcast %cst_32 : f32 to vector<1x256xf32>
    %57 = arith.mulf %55, %56 : vector<1x256xf32>
    %58 = vector.extract_strided_slice %57 {offsets = [0, 0], sizes = [1, 128], strides = [1, 1]} : vector<1x256xf32> to vector<1x128xf32>
    %59 = vector.extract_strided_slice %57 {offsets = [0, 128], sizes = [1, 128], strides = [1, 1]} : vector<1x256xf32> to vector<1x128xf32>
    %60 = arith.mulf %58, %58 : vector<1x128xf32>
    %61 = arith.subf %59, %60 : vector<1x128xf32>
    %c0_33 = arith.constant 0 : index
    %c0_34 = arith.constant 0 : index
    %62 = vector.load %arg7[%c0_33, %c0_34] : memref<1x128xf32, #tpu.memory_space<vmem>>, vector<1x128xf32>
    %cst_35 = arith.constant 9.99999974E-6 : f32
    %63 = vector.broadcast %cst_35 : f32 to vector<1x128xf32>
    %64 = arith.addf %61, %63 : vector<1x128xf32>
    %65 = math.rsqrt %64 : vector<1x128xf32>
    %66 = arith.mulf %62, %65 : vector<1x128xf32>
    %c0_36 = arith.constant 0 : index
    %c0_37 = arith.constant 0 : index
    %67 = vector.load %arg8[%c0_36, %c0_37] : memref<1x128xf32, #tpu.memory_space<vmem>>, vector<1x128xf32>
    %68 = arith.mulf %58, %66 : vector<1x128xf32>
    %69 = arith.subf %67, %68 : vector<1x128xf32>
    %70 = vector.broadcast %66 : vector<1x128xf32> to vector<32x128xf32>
    %71 = arith.mulf %51, %70 : vector<32x128xf32>
    %72 = vector.broadcast %69 : vector<1x128xf32> to vector<32x128xf32>
    %73 = arith.addf %71, %72 : vector<32x128xf32>
    %cst_38 = arith.constant 0.000000e+00 : f32
    %74 = vector.broadcast %cst_38 : f32 to vector<32x128xf32>
    %75 = arith.maximumf %73, %74 : vector<32x128xf32>
    %c0_39 = arith.constant 0 : index
    %c0_40 = arith.constant 0 : index
    %76 = vector.load %arg9[%c0_39, %c0_40] : memref<32x128xf32, #tpu.memory_space<vmem>>, vector<32x128xf32>
    tpu.vector_store %arg9[%c0_39, %c0_40], %75 {strides = array<i32>} : memref<32x128xf32, #tpu.memory_space<vmem>>, vector<32x128xf32>,
    return
  }
}

</mosaic_0001>

<llo_original>
// kernel: _encoder_block_fwd.1
$region0: #{_encoder_block_fwd.1}
  #allocation0 [shape = 'u32[]', space=smem, size = 0x4, offset = 0x4, fixed_abs, tag = 'smem constant byte address 0x4 - core index']
  #allocation1 [shape = 'u32[144,128]{1,0:T(1,128)}', space=vmem, size = 0x12000, scoped, tag = 'internal scratch']
  #allocation2 [shape = 'f32[48,128]{1,0:T(8,128)}', space=vmem, size = 0x6000, scoped, tag = 'scratch operand']
  %s0 = inlined_call_operand.vmem [shape: f32[32,128], index: 0, kind: input, shape index: {}]
  %s1 = inlined_call_operand.vmem [shape: f32[32,1], index: 1, kind: input, shape index: {}]
  %s2 = inlined_call_operand.vmem [shape: f32[32,1], index: 2, kind: input, shape index: {}]
  %s3 = inlined_call_operand.vmem [shape: bf16[384,128], index: 3, kind: input, shape index: {}]
  %s4 = inlined_call_operand.vmem [shape: f32[1,128], index: 4, kind: input, shape index: {}]
  %s5 = inlined_call_operand.vmem [shape: f32[1,128], index: 5, kind: input, shape index: {}]
  %s6 = inlined_call_operand.vmem [shape: bf16[384,128], index: 6, kind: input, shape index: {}]
  %s7 = inlined_call_operand.vmem [shape: f32[1,128], index: 7, kind: input, shape index: {}]
  %s8 = inlined_call_operand.vmem [shape: f32[1,128], index: 8, kind: input, shape index: {}]
  %s9 = inlined_call_operand.hbm [shape: f32[32,128], index: 9, kind: output, shape index: {}]
  %s10 = sld [smem:[#allocation0]]
  $region46: #{_encoder_block_fwd.1} parent=0
    _
  %s12 = ssub.s32 1, %s10
  %s13 = scalar_select 0, %s12, %s10
  $region1: #{_encoder_block_fwd.1} parent=0
    #allocation3 [shape = 'u8[16384]{0}', space=vmem, size = 0x4000, scoped, tag = 'output window, operand 0, single buffered']
    #allocation4 [shape = 's32[1]{0}', space=sflag, size = 0x4, scoped, tag = 'scoped memory for _encoder_block_fwd.1']
    %14 = vsyncpa [#allocation4], 0
    // Predicated region
    $region2: #{_encoder_block_fwd.1} parent=1 // pred_check
      _
    $region3: #{_encoder_block_fwd.1} parent=1 // pred_check_branch
      %16 = sbr.rel (0) target = $region5
    $region4: #{_encoder_block_fwd.1} parent=1 // pred_region
      _
    $region5: #{_encoder_block_fwd.1} parent=1 // pred_fallthru
      _
    // Predicated region
    $region6: #{_encoder_block_fwd.1} parent=1 // pred_check
      _
    $region7: #{_encoder_block_fwd.1} parent=1 // pred_check_branch
      %18 = sbr.rel (0) target = $region9
    $region8: #{_encoder_block_fwd.1} parent=1 // pred_region
      _
    $region9: #{_encoder_block_fwd.1} parent=1 // pred_fallthru
      _
    // Predicated region
    $region10: #{_encoder_block_fwd.1} parent=1 // pred_check
      _
    $region11: #{_encoder_block_fwd.1} parent=1 // pred_check_branch
      %20 = sbr.rel (0) target = $region13
    $region12: #{_encoder_block_fwd.1} parent=1 // pred_region
      _
    $region13: #{_encoder_block_fwd.1} parent=1 // pred_fallthru
      _
    // Predicated region
    $region14: #{_encoder_block_fwd.1} parent=1 // pred_check
      _
    $region15: #{_encoder_block_fwd.1} parent=1 // pred_check_branch
      %22 = sbr.rel (0) target = $region17
    $region16: #{_encoder_block_fwd.1} parent=1 // pred_region
      _
    $region17: #{_encoder_block_fwd.1} parent=1 // pred_fallthru
      _
    // Predicated region
    $region18: #{_encoder_block_fwd.1} parent=1 // pred_check
      _
    $region19: #{_encoder_block_fwd.1} parent=1 // pred_check_branch
      %24 = sbr.rel (0) target = $region21
    $region20: #{_encoder_block_fwd.1} parent=1 // pred_region
      _
    $region21: #{_encoder_block_fwd.1} parent=1 // pred_fallthru
      _
    // Predicated region
    $region22: #{_encoder_block_fwd.1} parent=1 // pred_check
      _
    $region23: #{_encoder_block_fwd.1} parent=1 // pred_check_branch
      %26 = sbr.rel (0) target = $region25
    $region24: #{_encoder_block_fwd.1} parent=1 // pred_region
      _
    $region25: #{_encoder_block_fwd.1} parent=1 // pred_fallthru
      _
    // Predicated region
    $region26: #{_encoder_block_fwd.1} parent=1 // pred_check
      _
    $region27: #{_encoder_block_fwd.1} parent=1 // pred_check_branch
      %28 = sbr.rel (0) target = $region29
    $region28: #{_encoder_block_fwd.1} parent=1 // pred_region
      _
    $region29: #{_encoder_block_fwd.1} parent=1 // pred_fallthru
      _
    // Predicated region
    $region30: #{_encoder_block_fwd.1} parent=1 // pred_check
      _
    $region31: #{_encoder_block_fwd.1} parent=1 // pred_check_branch
      %30 = sbr.rel (0) target = $region33
    $region32: #{_encoder_block_fwd.1} parent=1 // pred_region
      _
    $region33: #{_encoder_block_fwd.1} parent=1 // pred_fallthru
      _
    // Predicated region
    $region34: #{_encoder_block_fwd.1} parent=1 // pred_check
      _
    $region35: #{_encoder_block_fwd.1} parent=1 // pred_check_branch
      %32 = sbr.rel (0) target = $region37
    $region36: #{_encoder_block_fwd.1} parent=1 // pred_region
      _
    $region37: #{_encoder_block_fwd.1} parent=1 // pred_fallthru
      _
    %v34 = vld [vmem:[%s1] sm:$0xff]
    %v35 = vld [vmem:[%s1 + $0x8] sm:$0xff]
    %v36 = vld [vmem:[%s1 + $0x10] sm:$0xff]
    %v37 = vld [vmem:[%s1 + $0x18] sm:$0xff]
    %v38 = vld [vmem:[%s2] sm:$0xff]
    %v39 = vld [vmem:[%s2 + $0x8] sm:$0xff]
    %v40 = vld [vmem:[%s2 + $0x10] sm:$0xff]
    %v41 = vld [vmem:[%s2 + $0x18] sm:$0xff]
    %42 = vst [vmem:[#allocation2] sm:$0xff] 0.0
    %43 = vst [vmem:[#allocation2 + $0x28] sm:$0xff] 0.0
    %v44 = vld [vmem:[%s0] sm:$0xff]
    %v45 = vld [vmem:[%s0 + $0x8] sm:$0xff]
    %v46 = vld [vmem:[%s0 + $0x10] sm:$0xff]
    %v47 = vld [vmem:[%s0 + $0x18] sm:$0xff]
    %48 = vst [vmem:[#allocation2 + $0x8] sm:$0xff] %v44
    %49 = vst [vmem:[#allocation2 + $0x10] sm:$0xff] %v45
    %50 = vst [vmem:[#allocation2 + $0x18] sm:$0xff] %v46
    %51 = vst [vmem:[#allocation2 + $0x20] sm:$0xff] %v47
    %v52 = vld [vmem:[#allocation2 + $0x7] sm:$0xff]
    %v53 = vld [vmem:[#allocation2 + $0xf] sm:$0xff]
    %v54 = vld [vmem:[#allocation2 + $0x17] sm:$0xff]
    %v55 = vld [vmem:[#allocation2 + $0x1f] sm:$0xff]
    %57 = vset.pattern.permute.xlu0 0
    %58 = vperm.xlu0 %57, %v34
    %v59 = vpop.permute.xlu0 %58
    %62 = vset.pattern.permute.xlu0 0
    %63 = vperm.xlu0 %62, %v35
    %v64 = vpop.permute.xlu0 %63
    %67 = vset.pattern.permute.xlu0 0
    %68 = vperm.xlu0 %67, %v36
    %v69 = vpop.permute.xlu0 %68
    %72 = vset.pattern.permute.xlu0 0
    %73 = vperm.xlu0 %72, %v37
    %v74 = vpop.permute.xlu0 %73
    %v76 = vmul.f32 %v52, %v59
    %v77 = vmul.f32 %v53, %v64
    %v78 = vmul.f32 %v54, %v69
    %v79 = vmul.f32 %v55, %v74
    %v80 = vld [vmem:[#allocation2 + $0x9] sm:$0xff]
    %v81 = vld [vmem:[#allocation2 + $0x11] sm:$0xff]
    %v82 = vld [vmem:[#allocation2 + $0x19] sm:$0xff]
    %v83 = vld [vmem:[#allocation2 + $0x21] sm:$0xff]
    %85 = vset.pattern.permute.xlu0 0
    %86 = vperm.xlu0 %85, %v38
    %v87 = vpop.permute.xlu0 %86
    %90 = vset.pattern.permute.xlu0 0
    %91 = vperm.xlu0 %90, %v39
    %v92 = vpop.permute.xlu0 %91
    %95 = vset.pattern.permute.xlu0 0
    %96 = vperm.xlu0 %95, %v40
    %v97 = vpop.permute.xlu0 %96
    %100 = vset.pattern.permute.xlu0 0
    %101 = vperm.xlu0 %100, %v41
    %v102 = vpop.permute.xlu0 %101
    %v104 = vmul.f32 %v80, %v87
    %v105 = vmul.f32 %v81, %v92
    %v106 = vmul.f32 %v82, %v97
    %v107 = vmul.f32 %v83, %v102
    %v108 = vpack.c.bf16 %v77, %v76
    %v109 = vpack.c.bf16 %v45, %v44
    %v110 = vpack.c.bf16 %v105, %v104
    %v111 = vpack.c.bf16 %v79, %v78
    %v112 = vpack.c.bf16 %v47, %v46
    %v113 = vpack.c.bf16 %v107, %v106
    %v114 = vld [vmem:[%s3] sm:$0xf]
    %v115 = vld [vmem:[%s3 + $0x4] sm:$0xf]
    %v116 = vld [vmem:[%s3 + $0x8] sm:$0xf]
    %v117 = vld [vmem:[%s3 + $0xc] sm:$0xf]
    %v118 = vld [vmem:[%s3 + $0x10] sm:$0xf]
    %v119 = vld [vmem:[%s3 + $0x14] sm:$0xf]
    %v120 = vld [vmem:[%s3 + $0x18] sm:$0xf]
    %v121 = vld [vmem:[%s3 + $0x1c] sm:$0xf]
    %v122 = vld [vmem:[%s3 + $0x20] sm:$0xf]
    %v123 = vld [vmem:[%s3 + $0x24] sm:$0xf]
    %v124 = vld [vmem:[%s3 + $0x28] sm:$0xf]
    %v125 = vld [vmem:[%s3 + $0x2c] sm:$0xf]
    %v126 = vld [vmem:[%s3 + $0x30] sm:$0xf]
    %v127 = vld [vmem:[%s3 + $0x34] sm:$0xf]
    %v128 = vld [vmem:[%s3 + $0x38] sm:$0xf]
    %v129 = vld [vmem:[%s3 + $0x3c] sm:$0xf]
    %v130 = vld [vmem:[%s3 + $0x40] sm:$0xf]
    %v131 = vld [vmem:[%s3 + $0x44] sm:$0xf]
    %v132 = vld [vmem:[%s3 + $0x48] sm:$0xf]
    %v133 = vld [vmem:[%s3 + $0x4c] sm:$0xf]
    %v134 = vld [vmem:[%s3 + $0x50] sm:$0xf]
    %v135 = vld [vmem:[%s3 + $0x54] sm:$0xf]
    %v136 = vld [vmem:[%s3 + $0x58] sm:$0xf]
    %v137 = vld [vmem:[%s3 + $0x5c] sm:$0xf]
    %v138 = vld [vmem:[%s3 + $0x60] sm:$0xf]
    %v139 = vld [vmem:[%s3 + $0x64] sm:$0xf]
    %v140 = vld [vmem:[%s3 + $0x68] sm:$0xf]
    %v141 = vld [vmem:[%s3 + $0x6c] sm:$0xf]
    %v142 = vld [vmem:[%s3 + $0x70] sm:$0xf]
    %v143 = vld [vmem:[%s3 + $0x74] sm:$0xf]
    %v144 = vld [vmem:[%s3 + $0x78] sm:$0xf]
    %v145 = vld [vmem:[%s3 + $0x7c] sm:$0xf]
    %v146 = vld [vmem:[%s3 + $0x80] sm:$0xf]
    %v147 = vld [vmem:[%s3 + $0x84] sm:$0xf]
    %v148 = vld [vmem:[%s3 + $0x88] sm:$0xf]
    %v149 = vld [vmem:[%s3 + $0x8c] sm:$0xf]
    %v150 = vld [vmem:[%s3 + $0x90] sm:$0xf]
    %v151 = vld [vmem:[%s3 + $0x94] sm:$0xf]
    %v152 = vld [vmem:[%s3 + $0x98] sm:$0xf]
    %v153 = vld [vmem:[%s3 + $0x9c] sm:$0xf]
    %v154 = vld [vmem:[%s3 + $0xa0] sm:$0xf]
    %v155 = vld [vmem:[%s3 + $0xa4] sm:$0xf]
    %v156 = vld [vmem:[%s3 + $0xa8] sm:$0xf]
    %v157 = vld [vmem:[%s3 + $0xac] sm:$0xf]
    %v158 = vld [vmem:[%s3 + $0xb0] sm:$0xf]
    %v159 = vld [vmem:[%s3 + $0xb4] sm:$0xf]
    %v160 = vld [vmem:[%s3 + $0xb8] sm:$0xf]
    %v161 = vld [vmem:[%s3 + $0xbc] sm:$0xf]
    %v210 = vunpack.c.l.b16 %v114
    %v211 = vunpack.c.l.b16 %v115
    %v212 = vunpack.c.l.b16 %v116
    %v213 = vunpack.c.l.b16 %v117
    %v214 = vunpack.c.l.b16 %v118
    %v215 = vunpack.c.l.b16 %v119
    %v216 = vunpack.c.l.b16 %v120
    %v217 = vunpack.c.l.b16 %v121
    %v218 = vunpack.c.l.b16 %v122
    %v219 = vunpack.c.l.b16 %v123
    %v220 = vunpack.c.l.b16 %v124
    %v221 = vunpack.c.l.b16 %v125
    %v222 = vunpack.c.l.b16 %v126
    %v223 = vunpack.c.l.b16 %v127
    %v224 = vunpack.c.l.b16 %v128
    %v225 = vunpack.c.l.b16 %v129
    %v226 = vunpack.c.l.b16 %v130
    %v227 = vunpack.c.l.b16 %v131
    %v228 = vunpack.c.l.b16 %v132
    %v229 = vunpack.c.l.b16 %v133
    %v230 = vunpack.c.l.b16 %v134
    %v231 = vunpack.c.l.b16 %v135
    %v232 = vunpack.c.l.b16 %v136
    %v233 = vunpack.c.l.b16 %v137
    %v234 = vunpack.c.l.b16 %v138
    %v235 = vunpack.c.l.b16 %v139
    %v236 = vunpack.c.l.b16 %v140
    %v237 = vunpack.c.l.b16 %v141
    %v238 = vunpack.c.l.b16 %v142
    %v239 = vunpack.c.l.b16 %v143
    %v240 = vunpack.c.l.b16 %v144
    %v241 = vunpack.c.l.b16 %v145
    %v242 = vunpack.c.l.b16 %v146
    %v243 = vunpack.c.l.b16 %v147
    %v244 = vunpack.c.l.b16 %v148
    %v245 = vunpack.c.l.b16 %v149
    %v246 = vunpack.c.l.b16 %v150
    %v247 = vunpack.c.l.b16 %v151
    %v248 = vunpack.c.l.b16 %v152
    %v249 = vunpack.c.l.b16 %v153
    %v250 = vunpack.c.l.b16 %v154
    %v251 = vunpack.c.l.b16 %v155
    %v252 = vunpack.c.l.b16 %v156
    %v253 = vunpack.c.l.b16 %v157
    %v254 = vunpack.c.l.b16 %v158
    %v255 = vunpack.c.l.b16 %v159
    %v256 = vunpack.c.l.b16 %v160
    %v257 = vunpack.c.l.b16 %v161
    %v258 = vpack.c.b16 %v211, %v210
    %v259 = vpack.c.b16 %v213, %v212
    %v260 = vpack.c.b16 %v215, %v214
    %v261 = vpack.c.b16 %v217, %v216
    %v262 = vpack.c.b16 %v219, %v218
    %v263 = vpack.c.b16 %v221, %v220
    %v264 = vpack.c.b16 %v223, %v222
    %v265 = vpack.c.b16 %v225, %v224
    %v266 = vpack.c.b16 %v227, %v226
    %v267 = vpack.c.b16 %v229, %v228
    %v268 = vpack.c.b16 %v231, %v230
    %v269 = vpack.c.b16 %v233, %v232
    %v270 = vpack.c.b16 %v235, %v234
    %v271 = vpack.c.b16 %v237, %v236
    %v272 = vpack.c.b16 %v239, %v238
    %v273 = vpack.c.b16 %v241, %v240
    %v274 = vpack.c.b16 %v243, %v242
    %v275 = vpack.c.b16 %v245, %v244
    %v276 = vpack.c.b16 %v247, %v246
    %v277 = vpack.c.b16 %v249, %v248
    %v278 = vpack.c.b16 %v251, %v250
    %v279 = vpack.c.b16 %v253, %v252
    %v280 = vpack.c.b16 %v255, %v254
    %v281 = vpack.c.b16 %v257, %v256
    %306 = vmatprep.subr.bf16.mxu0 0
    %307 = vmatpush1.bf16.msra.mxu0 %v265
    %308 = vmatprep.subr.bf16.mxu0 0
    %309 = vmatpush1.bf16.msra.mxu0 %v264
    %310 = vmatprep.subr.bf16.mxu0 0
    %311 = vmatpush1.bf16.msra.mxu0 %v263
    %312 = vmatprep.subr.bf16.mxu0 0
    %313 = vmatpush1.bf16.msra.mxu0 %v262
    %314 = vmatprep.subr.bf16.mxu0 0
    %315 = vmatpush1.bf16.msra.mxu0 %v261
    %316 = vmatprep.subr.bf16.mxu0 0
    %317 = vmatpush1.bf16.msra.mxu0 %v260
    %318 = vmatprep.subr.bf16.mxu0 0
    %319 = vmatpush1.bf16.msra.mxu0 %v259
    %320 = vmatprep.subr.bf16.mxu0 0
    %321 = vmatpush1.bf16.msra.mxu0 %v258
    %322 = vmatprep.subr.bf16.mxu0 0
    %323 = vmatpush2.bf16.msra.mxu0 %v273
    %324 = vmatprep.subr.bf16.mxu0 0
    %325 = vmatpush2.bf16.msra.mxu0 %v272
    %326 = vmatprep.subr.bf16.mxu0 0
    %327 = vmatpush2.bf16.msra.mxu0 %v271
    %328 = vmatprep.subr.bf16.mxu0 0
    %329 = vmatpush2.bf16.msra.mxu0 %v270
    %330 = vmatprep.subr.bf16.mxu0 0
    %331 = vmatpush2.bf16.msra.mxu0 %v269
    %332 = vmatprep.subr.bf16.mxu0 0
    %333 = vmatpush2.bf16.msra.mxu0 %v268
    %334 = vmatprep.subr.bf16.mxu0 0
    %335 = vmatpush2.bf16.msra.mxu0 %v267
    %336 = vmatprep.subr.bf16.mxu0 0
    %337 = vmatpush2.bf16.msra.mxu0 %v266
    %338 = vmatprep.mubr.bf16.mxu0 %v109
    %339 = vmatmul.mubr.bf16.gmra.mxu0 %v108
    %v340 = vpop.f32.mrf.mxu0
    %v341 = vadd.f32 0.0, %v340
    %v342 = vpop.f32.mrf.mxu0
    %v343 = vpop.f32.mrf.mxu0
    %v344 = vadd.f32 0.0, %v343
    %v345 = vpop.f32.mrf.mxu0
    %346 = vmatprep.mubr.bf16.mxu0 %v112
    %347 = vmatmul.mubr.bf16.gmra.mxu0 %v111
    %v348 = vpop.f32.mrf.mxu0
    %v349 = vadd.f32 0.0, %v348
    %v350 = vpop.f32.mrf.mxu0
    %v351 = vpop.f32.mrf.mxu0
    %v352 = vadd.f32 0.0, %v351
    %v353 = vpop.f32.mrf.mxu0
    %354 = vdwg.mxu0
    %355 = vmatprep.subr.bf16.mxu0 0
    %356 = vmatpush1.bf16.msra.mxu0 %v281
    %357 = vmatprep.subr.bf16.mxu0 0
    %358 = vmatpush1.bf16.msra.mxu0 %v280
    %359 = vmatprep.subr.bf16.mxu0 0
    %360 = vmatpush1.bf16.msra.mxu0 %v279
    %361 = vmatprep.subr.bf16.mxu0 0
    %362 = vmatpush1.bf16.msra.mxu0 %v278
    %363 = vmatprep.subr.bf16.mxu0 0
    %364 = vmatpush1.bf16.msra.mxu0 %v277
    %365 = vmatprep.subr.bf16.mxu0 0
    %366 = vmatpush1.bf16.msra.mxu0 %v276
    %367 = vmatprep.subr.bf16.mxu0 0
    %368 = vmatpush1.bf16.msra.mxu0 %v275
    %369 = vmatprep.subr.bf16.mxu0 0
    %370 = vmatpush1.bf16.msra.mxu0 %v274
    %371 = vmatprep.subr.bf16.mxu0 0
    %372 = vmatpush2.bf16.msra.mxu0 0
    %373 = vmatprep.subr.bf16.mxu0 0
    %374 = vmatpush2.bf16.msra.mxu0 0
    %375 = vmatprep.subr.bf16.mxu0 0
    %376 = vmatpush2.bf16.msra.mxu0 0
    %377 = vmatprep.subr.bf16.mxu0 0
    %378 = vmatpush2.bf16.msra.mxu0 0
    %379 = vmatprep.subr.bf16.mxu0 0
    %380 = vmatpush2.bf16.msra.mxu0 0
    %381 = vmatprep.subr.bf16.mxu0 0
    %382 = vmatpush2.bf16.msra.mxu0 0
    %383 = vmatprep.subr.bf16.mxu0 0
    %384 = vmatpush2.bf16.msra.mxu0 0
    %385 = vmatprep.subr.bf16.mxu0 0
    %386 = vmatpush2.bf16.msra.mxu0 0
    %387 = vmatprep.mubr.bf16.mxu0 0
    %388 = vmatmul.mubr.bf16.gmra.mxu0 %v110
    %v389 = vpop.f32.mrf.mxu0
    %v390 = vadd.f32 %v341, %v389
    %v391 = vpop.f32.mrf.mxu0
    %v392 = vpop.f32.mrf.mxu0
    %v393 = vadd.f32 %v344, %v392
    %v394 = vpop.f32.mrf.mxu0
    %395 = vmatprep.mubr.bf16.mxu0 0
    %396 = vmatmul.mubr.bf16.gmra.mxu0 %v113
    %v397 = vpop.f32.mrf.mxu0
    %v398 = vadd.f32 %v349, %v397
    %v399 = vpop.f32.mrf.mxu0
    %v400 = vpop.f32.mrf.mxu0
    %v401 = vadd.f32 %v352, %v400
    %v402 = vpop.f32.mrf.mxu0
    %403 = vdwg.mxu0
    %v404 = vmul.f32 %v390, %v390
    %v405 = vmul.f32 %v393, %v393
    %v406 = vmul.f32 %v398, %v398
    %v407 = vmul.f32 %v401, %v401
    %v408 = vadd.f32 %v390, %v393
    %v409 = vadd.f32 %v408, %v398
    %v410 = vadd.f32 %v409, %v401
    %v411 = vrot.slane %v410, 4
    %v412 = vadd.f32 %v410, %v411
    %v413 = vrot.slane %v412, 2
    %v414 = vadd.f32 %v412, %v413
    %v415 = vrot.slane %v414, 1
    %v416 = vadd.f32 %v414, %v415
    %v417 = vadd.f32 %v404, %v405
    %v418 = vadd.f32 %v417, %v406
    %v419 = vadd.f32 %v418, %v407
    %v420 = vrot.slane %v419, 4
    %v421 = vadd.f32 %v419, %v420
    %v422 = vrot.slane %v421, 2
    %v423 = vadd.f32 %v421, %v422
    %v424 = vrot.slane %v423, 1
    %v425 = vadd.f32 %v423, %v424
    %v426 = vmul.f32 %v416, 0.03125
    %v427 = vmul.f32 %v425, 0.03125
    %v428 = vmul.f32 %v426, %v426
    %v429 = vsub.f32 %v427, %v428
    %v430 = vld [vmem:[%s4] sm:$0x1]
    %v431 = vadd.f32 %v429, 1e-05
    %v432 = vrsqrt.pop %v431
    %v433 = vmul.f32 %v430, %v432
    %v434 = vld [vmem:[%s5] sm:$0x1]
    %v435 = vmul.f32 %v426, %v433
    %v436 = vsub.f32 %v434, %v435
    %v438 = vlaneseq
    %v439 = vshrl.u32 %v438, 7
    %v440 = vsub.s32 0, %v439
    %v441 = vrot.slane %v433, %v440
    %v443 = vmul.f32 %v390, %v441
    %v444 = vmul.f32 %v393, %v441
    %v445 = vmul.f32 %v398, %v441
    %v446 = vmul.f32 %v401, %v441
    %v448 = vlaneseq
    %v449 = vshrl.u32 %v448, 7
    %v450 = vsub.s32 0, %v449
    %v451 = vrot.slane %v436, %v450
    %v453 = vadd.f32 %v443, %v451
    %v454 = vadd.f32 %v444, %v451
    %v455 = vadd.f32 %v445, %v451
    %v456 = vadd.f32 %v446, %v451
    %v457 = vmax.f32 %v453, 0.0
    %v458 = vmax.f32 %v454, 0.0
    %v459 = vmax.f32 %v455, 0.0
    %v460 = vmax.f32 %v456, 0.0
    %461 = vst [vmem:[#allocation2 + $0x8] sm:$0xff] %v457
    %462 = vst [vmem:[#allocation2 + $0x10] sm:$0xff] %v458
    %463 = vst [vmem:[#allocation2 + $0x18] sm:$0xff] %v459
    %464 = vst [vmem:[#allocation2 + $0x20] sm:$0xff] %v460
    %v465 = vld [vmem:[#allocation2 + $0x7] sm:$0xff]
    %v466 = vld [vmem:[#allocation2 + $0xf] sm:$0xff]
    %v467 = vld [vmem:[#allocation2 + $0x17] sm:$0xff]
    %v468 = vld [vmem:[#allocation2 + $0x1f] sm:$0xff]
    %v469 = vmul.f32 %v465, %v59
    %v470 = vmul.f32 %v466, %v64
    %v471 = vmul.f32 %v467, %v69
    %v472 = vmul.f32 %v468, %v74
    %v473 = vld [vmem:[#allocation2 + $0x9] sm:$0xff]
    %v474 = vld [vmem:[#allocation2 + $0x11] sm:$0xff]
    %v475 = vld [vmem:[#allocation2 + $0x19] sm:$0xff]
    %v476 = vld [vmem:[#allocation2 + $0x21] sm:$0xff]
    %v477 = vmul.f32 %v473, %v87
    %v478 = vmul.f32 %v474, %v92
    %v479 = vmul.f32 %v475, %v97
    %v480 = vmul.f32 %v476, %v102
    %v481 = vpack.c.bf16 %v470, %v469
    %v482 = vpack.c.bf16 %v458, %v457
    %v483 = vpack.c.bf16 %v478, %v477
    %v484 = vpack.c.bf16 %v472, %v471
    %v485 = vpack.c.bf16 %v460, %v459
    %v486 = vpack.c.bf16 %v480, %v479
    %v487 = vld [vmem:[%s6] sm:$0xf]
    %v488 = vld [vmem:[%s6 + $0x4] sm:$0xf]
    %v489 = vld [vmem:[%s6 + $0x8] sm:$0xf]
    %v490 = vld [vmem:[%s6 + $0xc] sm:$0xf]
    %v491 = vld [vmem:[%s6 + $0x10] sm:$0xf]
    %v492 = vld [vmem:[%s6 + $0x14] sm:$0xf]
    %v493 = vld [vmem:[%s6 + $0x18] sm:$0xf]
    %v494 = vld [vmem:[%s6 + $0x1c] sm:$0xf]
    %v495 = vld [vmem:[%s6 + $0x20] sm:$0xf]
    %v496 = vld [vmem:[%s6 + $0x24] sm:$0xf]
    %v497 = vld [vmem:[%s6 + $0x28] sm:$0xf]
    %v498 = vld [vmem:[%s6 + $0x2c] sm:$0xf]
    %v499 = vld [vmem:[%s6 + $0x30] sm:$0xf]
    %v500 = vld [vmem:[%s6 + $0x34] sm:$0xf]
    %v501 = vld [vmem:[%s6 + $0x38] sm:$0xf]
    %v502 = vld [vmem:[%s6 + $0x3c] sm:$0xf]
    %v503 = vld [vmem:[%s6 + $0x40] sm:$0xf]
    %v504 = vld [vmem:[%s6 + $0x44] sm:$0xf]
    %v505 = vld [vmem:[%s6 + $0x48] sm:$0xf]
    %v506 = vld [vmem:[%s6 + $0x4c] sm:$0xf]
    %v507 = vld [vmem:[%s6 + $0x50] sm:$0xf]
    %v508 = vld [vmem:[%s6 + $0x54] sm:$0xf]
    %v509 = vld [vmem:[%s6 + $0x58] sm:$0xf]
    %v510 = vld [vmem:[%s6 + $0x5c] sm:$0xf]
    %v511 = vld [vmem:[%s6 + $0x60] sm:$0xf]
    %v512 = vld [vmem:[%s6 + $0x64] sm:$0xf]
    %v513 = vld [vmem:[%s6 + $0x68] sm:$0xf]
    %v514 = vld [vmem:[%s6 + $0x6c] sm:$0xf]
    %v515 = vld [vmem:[%s6 + $0x70] sm:$0xf]
    %v516 = vld [vmem:[%s6 + $0x74] sm:$0xf]
    %v517 = vld [vmem:[%s6 + $0x78] sm:$0xf]
    %v518 = vld [vmem:[%s6 + $0x7c] sm:$0xf]
    %v519 = vld [vmem:[%s6 + $0x80] sm:$0xf]
    %v520 = vld [vmem:[%s6 + $0x84] sm:$0xf]
    %v521 = vld [vmem:[%s6 + $0x88] sm:$0xf]
    %v522 = vld [vmem:[%s6 + $0x8c] sm:$0xf]
    %v523 = vld [vmem:[%s6 + $0x90] sm:$0xf]
    %v524 = vld [vmem:[%s6 + $0x94] sm:$0xf]
    %v525 = vld [vmem:[%s6 + $0x98] sm:$0xf]
    %v526 = vld [vmem:[%s6 + $0x9c] sm:$0xf]
    %v527 = vld [vmem:[%s6 + $0xa0] sm:$0xf]
    %v528 = vld [vmem:[%s6 + $0xa4] sm:$0xf]
    %v529 = vld [vmem:[%s6 + $0xa8] sm:$0xf]
    %v530 = vld [vmem:[%s6 + $0xac] sm:$0xf]
    %v531 = vld [vmem:[%s6 + $0xb0] sm:$0xf]
    %v532 = vld [vmem:[%s6 + $0xb4] sm:$0xf]
    %v533 = vld [vmem:[%s6 + $0xb8] sm:$0xf]
    %v534 = vld [vmem:[%s6 + $0xbc] sm:$0xf]
    %v583 = vunpack.c.l.b16 %v487
    %v584 = vunpack.c.l.b16 %v488
    %v585 = vunpack.c.l.b16 %v489
    %v586 = vunpack.c.l.b16 %v490
    %v587 = vunpack.c.l.b16 %v491
    %v588 = vunpack.c.l.b16 %v492
    %v589 = vunpack.c.l.b16 %v493
    %v590 = vunpack.c.l.b16 %v494
    %v591 = vunpack.c.l.b16 %v495
    %v592 = vunpack.c.l.b16 %v496
    %v593 = vunpack.c.l.b16 %v497
    %v594 = vunpack.c.l.b16 %v498
    %v595 = vunpack.c.l.b16 %v499
    %v596 = vunpack.c.l.b16 %v500
    %v597 = vunpack.c.l.b16 %v501
    %v598 = vunpack.c.l.b16 %v502
    %v599 = vunpack.c.l.b16 %v503
    %v600 = vunpack.c.l.b16 %v504
    %v601 = vunpack.c.l.b16 %v505
    %v602 = vunpack.c.l.b16 %v506
    %v603 = vunpack.c.l.b16 %v507
    %v604 = vunpack.c.l.b16 %v508
    %v605 = vunpack.c.l.b16 %v509
    %v606 = vunpack.c.l.b16 %v510
    %v607 = vunpack.c.l.b16 %v511
    %v608 = vunpack.c.l.b16 %v512
    %v609 = vunpack.c.l.b16 %v513
    %v610 = vunpack.c.l.b16 %v514
    %v611 = vunpack.c.l.b16 %v515
    %v612 = vunpack.c.l.b16 %v516
    %v613 = vunpack.c.l.b16 %v517
    %v614 = vunpack.c.l.b16 %v518
    %v615 = vunpack.c.l.b16 %v519
    %v616 = vunpack.c.l.b16 %v520
    %v617 = vunpack.c.l.b16 %v521
    %v618 = vunpack.c.l.b16 %v522
    %v619 = vunpack.c.l.b16 %v523
    %v620 = vunpack.c.l.b16 %v524
    %v621 = vunpack.c.l.b16 %v525
    %v622 = vunpack.c.l.b16 %v526
    %v623 = vunpack.c.l.b16 %v527
    %v624 = vunpack.c.l.b16 %v528
    %v625 = vunpack.c.l.b16 %v529
    %v626 = vunpack.c.l.b16 %v530
    %v627 = vunpack.c.l.b16 %v531
    %v628 = vunpack.c.l.b16 %v532
    %v629 = vunpack.c.l.b16 %v533
    %v630 = vunpack.c.l.b16 %v534
    %v631 = vpack.c.b16 %v584, %v583
    %v632 = vpack.c.b16 %v586, %v585
    %v633 = vpack.c.b16 %v588, %v587
    %v634 = vpack.c.b16 %v590, %v589
    %v635 = vpack.c.b16 %v592, %v591
    %v636 = vpack.c.b16 %v594, %v593
    %v637 = vpack.c.b16 %v596, %v595
    %v638 = vpack.c.b16 %v598, %v597
    %v639 = vpack.c.b16 %v600, %v599
    %v640 = vpack.c.b16 %v602, %v601
    %v641 = vpack.c.b16 %v604, %v603
    %v642 = vpack.c.b16 %v606, %v605
    %v643 = vpack.c.b16 %v608, %v607
    %v644 = vpack.c.b16 %v610, %v609
    %v645 = vpack.c.b16 %v612, %v611
    %v646 = vpack.c.b16 %v614, %v613
    %v647 = vpack.c.b16 %v616, %v615
    %v648 = vpack.c.b16 %v618, %v617
    %v649 = vpack.c.b16 %v620, %v619
    %v650 = vpack.c.b16 %v622, %v621
    %v651 = vpack.c.b16 %v624, %v623
    %v652 = vpack.c.b16 %v626, %v625
    %v653 = vpack.c.b16 %v628, %v627
    %v654 = vpack.c.b16 %v630, %v629
    %679 = vmatprep.subr.bf16.mxu0 0
    %680 = vmatpush1.bf16.msra.mxu0 %v638
    %681 = vmatprep.subr.bf16.mxu0 0
    %682 = vmatpush1.bf16.msra.mxu0 %v637
    %683 = vmatprep.subr.bf16.mxu0 0
    %684 = vmatpush1.bf16.msra.mxu0 %v636
    %685 = vmatprep.subr.bf16.mxu0 0
    %686 = vmatpush1.bf16.msra.mxu0 %v635
    %687 = vmatprep.subr.bf16.mxu0 0
    %688 = vmatpush1.bf16.msra.mxu0 %v634
    %689 = vmatprep.subr.bf16.mxu0 0
    %690 = vmatpush1.bf16.msra.mxu0 %v633
    %691 = vmatprep.subr.bf16.mxu0 0
    %692 = vmatpush1.bf16.msra.mxu0 %v632
    %693 = vmatprep.subr.bf16.mxu0 0
    %694 = vmatpush1.bf16.msra.mxu0 %v631
    %695 = vmatprep.subr.bf16.mxu0 0
    %696 = vmatpush2.bf16.msra.mxu0 %v646
    %697 = vmatprep.subr.bf16.mxu0 0
    %698 = vmatpush2.bf16.msra.mxu0 %v645
    %699 = vmatprep.subr.bf16.mxu0 0
    %700 = vmatpush2.bf16.msra.mxu0 %v644
    %701 = vmatprep.subr.bf16.mxu0 0
    %702 = vmatpush2.bf16.msra.mxu0 %v643
    %703 = vmatprep.subr.bf16.mxu0 0
    %704 = vmatpush2.bf16.msra.mxu0 %v642
    %705 = vmatprep.subr.bf16.mxu0 0
    %706 = vmatpush2.bf16.msra.mxu0 %v641
    %707 = vmatprep.subr.bf16.mxu0 0
    %708 = vmatpush2.bf16.msra.mxu0 %v640
    %709 = vmatprep.subr.bf16.mxu0 0
    %710 = vmatpush2.bf16.msra.mxu0 %v639
    %711 = vmatprep.mubr.bf16.mxu0 %v482
    %712 = vmatmul.mubr.bf16.gmra.mxu0 %v481
    %v713 = vpop.f32.mrf.mxu0
    %v714 = vadd.f32 0.0, %v713
    %v715 = vpop.f32.mrf.mxu0
    %v716 = vpop.f32.mrf.mxu0
    %v717 = vadd.f32 0.0, %v716
    %v718 = vpop.f32.mrf.mxu0
    %719 = vmatprep.mubr.bf16.mxu0 %v485
    %720 = vmatmul.mubr.bf16.gmra.mxu0 %v484
    %v721 = vpop.f32.mrf.mxu0
    %v722 = vadd.f32 0.0, %v721
    %v723 = vpop.f32.mrf.mxu0
    %v724 = vpop.f32.mrf.mxu0
    %v725 = vadd.f32 0.0, %v724
    %v726 = vpop.f32.mrf.mxu0
    %727 = vdwg.mxu0
    %728 = vmatprep.subr.bf16.mxu0 0
    %729 = vmatpush1.bf16.msra.mxu0 %v654
    %730 = vmatprep.subr.bf16.mxu0 0
    %731 = vmatpush1.bf16.msra.mxu0 %v653
    %732 = vmatprep.subr.bf16.mxu0 0
    %733 = vmatpush1.bf16.msra.mxu0 %v652
    %734 = vmatprep.subr.bf16.mxu0 0
    %735 = vmatpush1.bf16.msra.mxu0 %v651
    %736 = vmatprep.subr.bf16.mxu0 0
    %737 = vmatpush1.bf16.msra.mxu0 %v650
    %738 = vmatprep.subr.bf16.mxu0 0
    %739 = vmatpush1.bf16.msra.mxu0 %v649
    %740 = vmatprep.subr.bf16.mxu0 0
    %741 = vmatpush1.bf16.msra.mxu0 %v648
    %742 = vmatprep.subr.bf16.mxu0 0
    %743 = vmatpush1.bf16.msra.mxu0 %v647
    %744 = vmatprep.subr.bf16.mxu0 0
    %745 = vmatpush2.bf16.msra.mxu0 0
    %746 = vmatprep.subr.bf16.mxu0 0
    %747 = vmatpush2.bf16.msra.mxu0 0
    %748 = vmatprep.subr.bf16.mxu0 0
    %749 = vmatpush2.bf16.msra.mxu0 0
    %750 = vmatprep.subr.bf16.mxu0 0
    %751 = vmatpush2.bf16.msra.mxu0 0
    %752 = vmatprep.subr.bf16.mxu0 0
    %753 = vmatpush2.bf16.msra.mxu0 0
    %754 = vmatprep.subr.bf16.mxu0 0
    %755 = vmatpush2.bf16.msra.mxu0 0
    %756 = vmatprep.subr.bf16.mxu0 0
    %757 = vmatpush2.bf16.msra.mxu0 0
    %758 = vmatprep.subr.bf16.mxu0 0
    %759 = vmatpush2.bf16.msra.mxu0 0
    %760 = vmatprep.mubr.bf16.mxu0 0
    %761 = vmatmul.mubr.bf16.gmra.mxu0 %v483
    %v762 = vpop.f32.mrf.mxu0
    %v763 = vadd.f32 %v714, %v762
    %v764 = vpop.f32.mrf.mxu0
    %v765 = vpop.f32.mrf.mxu0
    %v766 = vadd.f32 %v717, %v765
    %v767 = vpop.f32.mrf.mxu0
    %768 = vmatprep.mubr.bf16.mxu0 0
    %769 = vmatmul.mubr.bf16.gmra.mxu0 %v486
    %v770 = vpop.f32.mrf.mxu0
    %v771 = vadd.f32 %v722, %v770
    %v772 = vpop.f32.mrf.mxu0
    %v773 = vpop.f32.mrf.mxu0
    %v774 = vadd.f32 %v725, %v773
    %v775 = vpop.f32.mrf.mxu0
    %776 = vdwg.mxu0
    %v777 = vmul.f32 %v763, %v763
    %v778 = vmul.f32 %v766, %v766
    %v779 = vmul.f32 %v771, %v771
    %v780 = vmul.f32 %v774, %v774
    %v781 = vadd.f32 %v763, %v766
    %v782 = vadd.f32 %v781, %v771
    %v783 = vadd.f32 %v782, %v774
    %v784 = vrot.slane %v783, 4
    %v785 = vadd.f32 %v783, %v784
    %v786 = vrot.slane %v785, 2
    %v787 = vadd.f32 %v785, %v786
    %v788 = vrot.slane %v787, 1
    %v789 = vadd.f32 %v787, %v788
    %v790 = vadd.f32 %v777, %v778
    %v791 = vadd.f32 %v790, %v779
    %v792 = vadd.f32 %v791, %v780
    %v793 = vrot.slane %v792, 4
    %v794 = vadd.f32 %v792, %v793
    %v795 = vrot.slane %v794, 2
    %v796 = vadd.f32 %v794, %v795
    %v797 = vrot.slane %v796, 1
    %v798 = vadd.f32 %v796, %v797
    %v799 = vmul.f32 %v789, 0.03125
    %v800 = vmul.f32 %v798, 0.03125
    %v801 = vmul.f32 %v799, %v799
    %v802 = vsub.f32 %v800, %v801
    %v803 = vld [vmem:[%s7] sm:$0x1]
    %v804 = vadd.f32 %v802, 1e-05
    %v805 = vrsqrt.pop %v804
    %v806 = vmul.f32 %v803, %v805
    %v807 = vld [vmem:[%s8] sm:$0x1]
    %v808 = vmul.f32 %v799, %v806
    %v809 = vsub.f32 %v807, %v808
    %v811 = vlaneseq
    %v812 = vshrl.u32 %v811, 7
    %v813 = vsub.s32 0, %v812
    %v814 = vrot.slane %v806, %v813
    %v816 = vmul.f32 %v763, %v814
    %v817 = vmul.f32 %v766, %v814
    %v818 = vmul.f32 %v771, %v814
    %v819 = vmul.f32 %v774, %v814
    %v821 = vlaneseq
    %v822 = vshrl.u32 %v821, 7
    %v823 = vsub.s32 0, %v822
    %v824 = vrot.slane %v809, %v823
    %v826 = vadd.f32 %v816, %v824
    %v827 = vadd.f32 %v817, %v824
    %v828 = vadd.f32 %v818, %v824
    %v829 = vadd.f32 %v819, %v824
    %v830 = vmax.f32 %v826, 0.0
    %v831 = vmax.f32 %v827, 0.0
    %v832 = vmax.f32 %v828, 0.0
    %v833 = vmax.f32 %v829, 0.0
    %834 = vst [vmem:[#allocation3] sm:$0xff] %v830
    %835 = vst [vmem:[#allocation3 + $0x8] sm:$0xff] %v831
    %836 = vst [vmem:[#allocation3 + $0x10] sm:$0xff] %v832
    %837 = vst [vmem:[#allocation3 + $0x18] sm:$0xff] %v833
    // Predicated region
    $region38: #{_encoder_block_fwd.1} parent=1 // pred_check
      _
    $region39: #{_encoder_block_fwd.1} parent=1 // pred_check_branch
      %839 = sbr.rel (0) target = $region41
    $region40: #{_encoder_block_fwd.1} parent=1 // pred_region
      %s841 = ssub.s32 512, 512
      %842 = vsyncadd [#allocation4], %s841
      %s843 = sshll.u32 [#allocation3], 4
      %s844 = int_to_ptr.vmem [resolvable:$true] %s843
      %849 = dma.vmem_to_hbm [thread:$0]  %s844, 512, %s9, [#allocation4], 128, 128, 8
    $region41: #{_encoder_block_fwd.1} parent=1 // pred_fallthru
      _
    // Predicated region
    $region42: #{_encoder_block_fwd.1} parent=1 // pred_check
      _
    $region43: #{_encoder_block_fwd.1} parent=1 // pred_check_branch
      %851 = sbr.rel (0) target = $region45
    $region44: #{_encoder_block_fwd.1} parent=1 // pred_region
      %852 = dma.done [#allocation4], 512
    $region45: #{_encoder_block_fwd.1} parent=1 // pred_fallthru
      _
    %853 = vsyncpa [#allocation4], 1

</llo_original>
